<compile_context>
chip_gen: v7x
topology: tpu7x:2x2x1
jax: 0.10.0
libtpu: 0.0.40
codegen_flags: <defaults>
</compile_context>

<pallas_src>
import functools

import jax
import jax.numpy as jnp
from jax import lax
from jax.experimental import pallas as pl
from jax.experimental.pallas import tpu as pltpu

_PAIRWISE_EPS = 1e-6  # torch F.pairwise_distance default eps


def _contrastive_loss_kernel(o1_ref, o2_ref, label_ref, partial_ref, *,
                             margin, seg_len, n_seg, batch_rows, tile_rows,
                             mask_remainder):
    o1 = o1_ref[...].astype(jnp.float32)       # (tile_rows, n_seg * seg_len)
    o2 = o2_ref[...].astype(jnp.float32)
    lab = label_ref[...].astype(jnp.float32)   # (tile_rows, n_seg)

    diff = o1 - o2 + _PAIRWISE_EPS             # torch adds eps to the diff
    sq = diff * diff

    if n_seg == 1:
        d2 = jnp.sum(sq, axis=-1, keepdims=True)                 # (tile_rows, 1)
    else:
        # Lane-dense packed layout: each 128-lane row holds n_seg logical rows
        # of seg_len features.  Exact f32 per-segment sums via contiguous lane
        # slices (XLU reductions; no matmul, no reshape of the lane axis).
        d2 = jnp.concatenate(
            [jnp.sum(sq[:, k * seg_len:(k + 1) * seg_len], axis=-1,
                     keepdims=True)
             for k in range(n_seg)],
            axis=-1)                                             # (tile_rows, n_seg)

    d = jnp.sqrt(d2)
    hinge = jnp.maximum(margin - d, 0.0)
    # (1 - lab) * d2 + lab * hinge^2  ==  d2 + lab * (hinge^2 - d2)
    per_elem = d2 + lab * (hinge * hinge - d2)                   # (tile_rows, n_seg)

    if mask_remainder:
        # Only emitted when the packed batch does not divide evenly into tiles.
        i = pl.program_id(0)
        rows = lax.broadcasted_iota(jnp.int32, per_elem.shape, 0) + i * tile_rows
        # Keep this a *select*: padded rows may hold NaN/Inf garbage.
        per_elem = jnp.where(rows < batch_rows, per_elem, 0.0)

    partial = jnp.sum(per_elem)                                  # scalar partial sum
    # One lane-dense (1, 8, 128) block per tile -> unmasked stores, and the
    # grid axis stays "parallel" (no carried accumulator).
    partial_ref[...] = jnp.broadcast_to(partial, partial_ref.shape).astype(
        jnp.float32)


def _default_vmem_budget_bytes():
    kind = ""
    try:
        kind = jax.devices()[0].device_kind.lower()
    except Exception:
        pass
    # v5e: only 16 MiB default scoped VMEM and the most bandwidth-starved chip;
    # stay well under the default limit.  v6e / v7x: grow tiles (explicit
    # vmem_limit_bytes is set below).
    if "v5e" in kind or "v5 lite" in kind or "v5lite" in kind:
        return 13 * 1024 * 1024
    return 26 * 1024 * 1024


def contrastive_loss(output1, output2, label, margin=2.0, tile_rows=None,
                     vmem_budget_bytes=None):
    """Pallas-backed equivalent of ContrastiveLoss(margin).forward."""
    assert output1.shape == output2.shape and output1.ndim == 2
    B, D = output1.shape
    assert label.shape == (B, 1)

    if vmem_budget_bytes is None:
        vmem_budget_bytes = _default_vmem_budget_bytes()

    # --- Lane-dense packing for small feature dims --------------------------
    if 8 <= D < 128 and (128 % D == 0) and (B % (128 // D) == 0):
        n_seg = 128 // D          # logical rows per 128-lane physical row
    else:
        n_seg = 1                 # fall back to the plain row-per-row layout
    Bp = B // n_seg               # packed batch rows
    Dp = n_seg * D                # packed feature lanes (=128 when packed)

    o1 = output1.reshape(Bp, Dp)
    o2 = output2.reshape(Bp, Dp)
    lab = label.reshape(Bp, n_seg)

    feat_itemsize = max(jnp.dtype(output1.dtype).itemsize,
                        jnp.dtype(output2.dtype).itemsize)
    lab_itemsize = jnp.dtype(label.dtype).itemsize

    # Sublane alignment: 8 rows per sublane tile x packing factor of the
    # narrowest streamed dtype (f32 -> 8, bf16 -> 16, int8/fp8 -> 32).
    align = 8 * max(max(1, 4 // feat_itemsize), max(1, 4 // lab_itemsize))

    # --- Padding-aware per-row VMEM cost ------------------------------------
    feat_lanes = pl.cdiv(Dp, 128) * 128          # features pad to 128-lane rows
    lab_lanes = 128                              # (tile, n_seg) pads to 128 lanes
    per_row_bytes = (2 * 2 * feat_lanes * feat_itemsize   # o1, o2 x double buffer
                     + 2 * lab_lanes * lab_itemsize       # label x double buffer
                     + 6 * feat_lanes * 4)                # f32 in-kernel working set
    out_block_bytes = 2 * 8 * 128 * 4                     # double-buffered output

    user_tile = tile_rows is not None
    if tile_rows is None:
        usable = max(per_row_bytes,
                     vmem_budget_bytes - out_block_bytes - (256 << 10))
        tile_rows = max(align, int(usable // per_row_bytes))
    tile_rows = int(tile_rows)

    if tile_rows >= Bp:
        tile_rows = Bp                           # single full-extent block
    else:
        tile_rows = max(align, (tile_rows // align) * align)
        tile_rows = min(tile_rows, Bp)

    num_tiles = int(pl.cdiv(Bp, tile_rows))

    # Prefer an even number of grid steps so the "parallel" grid axis splits
    # evenly across v7x's two TensorCores (best effort; auto-tiling only).
    if (not user_tile) and num_tiles > 1 and (num_tiles % 2 == 1):
        alt = int(pl.cdiv(Bp, num_tiles + 1))
        alt = max(align, ((alt + align - 1) // align) * align)
        if alt < Bp:
            alt_tiles = int(pl.cdiv(Bp, alt))
            if alt_tiles % 2 == 0:
                tile_rows, num_tiles = alt, alt_tiles

    mask_remainder = (Bp % tile_rows) != 0

    kernel = functools.partial(
        _contrastive_loss_kernel, margin=float(margin), seg_len=D,
        n_seg=n_seg, batch_rows=Bp, tile_rows=tile_rows,
        mask_remainder=mask_remainder)

    cost = pl.CostEstimate(
        flops=int(6 * B * D + 10 * B),
        transcendentals=int(B),
        bytes_accessed=int(2 * B * D * feat_itemsize + B * lab_itemsize
                           + num_tiles * 8 * 128 * 4),
    )

    partials = pl.pallas_call(
        kernel,
        out_shape=jax.ShapeDtypeStruct((num_tiles, 8, 128), jnp.float32),
        grid=(num_tiles,),
        in_specs=[
            pl.BlockSpec((tile_rows, Dp), lambda i: (i, 0)),
            pl.BlockSpec((tile_rows, Dp), lambda i: (i, 0)),
            pl.BlockSpec((tile_rows, n_seg), lambda i: (i, 0)),
        ],
        out_specs=pl.BlockSpec((1, 8, 128), lambda i: (i, 0, 0)),
        compiler_params=pltpu.CompilerParams(
            dimension_semantics=("parallel",),
            vmem_limit_bytes=int(vmem_budget_bytes + 6 * 1024 * 1024)),
        cost_estimate=cost,
    )(o1, o2, lab)

    # Tiny finalize in plain JAX: sum the per-tile partials, divide by true B.
    return jnp.sum(partials[:, 0, 0]) / jnp.float32(B)


def _reference_loss(output1, output2, label, margin=2.0):
    # Pure-JAX reference mirroring the PyTorch module.
    diff = (output1.astype(jnp.float32) - output2.astype(jnp.float32)
            + _PAIRWISE_EPS)
    d = jnp.sqrt(jnp.sum(diff * diff, axis=-1, keepdims=True))
    hinge = jnp.maximum(margin - d, 0.0)
    lab = label.astype(jnp.float32)
    return jnp.mean((1.0 - lab) * d ** 2 + lab * hinge ** 2)


if __name__ == "__main__":
    key = jax.random.PRNGKey(0)
    keys = jax.random.split(key, 9)

    # Test 1: module-consistent small shape (batch=8, hidden=32) ->
    # lane-dense packed path (4 logical rows per 128-lane row), single tile.
    B, D = 8, 32
    o1 = jax.random.normal(keys[0], (B, D), dtype=jnp.float32)
    o2 = jax.random.normal(keys[1], (B, D), dtype=jnp.float32)
    lab = jax.random.bernoulli(keys[2], 0.5, (B, 1)).astype(jnp.float32)
    loss = jax.block_until_ready(contrastive_loss(o1, o2, lab, margin=2.0))
    ref = _reference_loss(o1, o2, lab, margin=2.0)
    assert jnp.allclose(loss, ref, rtol=1e-5, atol=1e-5), (loss, ref)

    # Test 2: packed multi-tile path with a ragged last tile + masking
    # (B=80 -> 20 packed rows; tile_rows=8 -> tiles of 8 / 8 / 4 packed rows).
    B2, D2 = 80, 32
    o1b = jax.random.normal(keys[3], (B2, D2), dtype=jnp.float32)
    o2b = jax.random.normal(keys[4], (B2, D2), dtype=jnp.float32)
    labb = jax.random.bernoulli(keys[5], 0.5, (B2, 1)).astype(jnp.float32)
    loss2 = jax.block_until_ready(
        contrastive_loss(o1b, o2b, labb, margin=2.0, tile_rows=8))
    ref2 = _reference_loss(o1b, o2b, labb, margin=2.0)
    assert jnp.allclose(loss2, ref2, rtol=1e-5, atol=1e-5), (loss2, ref2)

    # Test 3: unpacked fallback path (D=48 does not divide 128).
    B3, D3 = 12, 48
    o1c = jax.random.normal(keys[6], (B3, D3), dtype=jnp.float32)
    o2c = jax.random.normal(keys[7], (B3, D3), dtype=jnp.float32)
    labc = jax.random.bernoulli(keys[8], 0.5, (B3, 1)).astype(jnp.float32)
    loss3 = jax.block_until_ready(contrastive_loss(o1c, o2c, labc, margin=2.0))
    ref3 = _reference_loss(o1c, o2c, labc, margin=2.0)
    assert jnp.allclose(loss3, ref3, rtol=1e-5, atol=1e-5), (loss3, ref3)

    print("KERNEL_OK")
</pallas_src>

<mosaic_0001>
module attributes {stable_mosaic.version = 11 : i64} {
  func.func @_contrastive_loss_kernel(%arg0: i32, %arg1: memref<2x128xf32, #tpu.memory_space<vmem>>, %arg2: memref<2x128xf32, #tpu.memory_space<vmem>>, %arg3: memref<2x4xf32, #tpu.memory_space<vmem>>, %arg4: memref<1x8x128xf32, #tpu.memory_space<vmem>>) attributes {dimension_semantics = [#tpu.dimension_semantics<parallel>], iteration_bounds = array<i64: 1>, scalar_prefetch = 0 : i64, scratch_operands = 0 : i64, tpu.core_type = #tpu.core_type<tc>, window_params = [{transform_indices = @transform_0, window_bounds = array<i64: 2, 128>}, {transform_indices = @transform_1, window_bounds = array<i64: 2, 128>}, {transform_indices = @transform_2, window_bounds = array<i64: 2, 4>}, {transform_indices = @transform_3, window_bounds = array<i64: 1, 8, 128>}]} {
    %c0 = arith.constant 0 : index
    %c0_0 = arith.constant 0 : index
    %0 = vector.load %arg1[%c0, %c0_0] : memref<2x128xf32, #tpu.memory_space<vmem>>, vector<2x128xf32>
    %c0_1 = arith.constant 0 : index
    %c0_2 = arith.constant 0 : index
    %1 = vector.load %arg2[%c0_1, %c0_2] : memref<2x128xf32, #tpu.memory_space<vmem>>, vector<2x128xf32>
    %c0_3 = arith.constant 0 : index
    %c0_4 = arith.constant 0 : index
    %2 = vector.load %arg3[%c0_3, %c0_4] : memref<2x4xf32, #tpu.memory_space<vmem>>, vector<2x4xf32>
    %3 = arith.subf %0, %1 : vector<2x128xf32>
    %cst = arith.constant 9.99999997E-7 : f32
    %4 = vector.broadcast %cst : f32 to vector<2x128xf32>
    %5 = arith.addf %3, %4 : vector<2x128xf32>
    %6 = arith.mulf %5, %5 : vector<2x128xf32>
    %7 = vector.extract_strided_slice %6 {offsets = [0, 0], sizes = [2, 32], strides = [1, 1]} : vector<2x128xf32> to vector<2x32xf32>
    %cst_5 = arith.constant dense<0.000000e+00> : vector<2xf32>
    %8 = vector.multi_reduction <add>, %7, %cst_5 [1] : vector<2x32xf32> to vector<2xf32>
    %9 = vector.shape_cast %8 : vector<2xf32> to vector<2x1xf32>
    %10 = vector.extract_strided_slice %6 {offsets = [0, 32], sizes = [2, 32], strides = [1, 1]} : vector<2x128xf32> to vector<2x32xf32>
    %cst_6 = arith.constant dense<0.000000e+00> : vector<2xf32>
    %11 = vector.multi_reduction <add>, %10, %cst_6 [1] : vector<2x32xf32> to vector<2xf32>
    %12 = vector.shape_cast %11 : vector<2xf32> to vector<2x1xf32>
    %13 = vector.extract_strided_slice %6 {offsets = [0, 64], sizes = [2, 32], strides = [1, 1]} : vector<2x128xf32> to vector<2x32xf32>
    %cst_7 = arith.constant dense<0.000000e+00> : vector<2xf32>
    %14 = vector.multi_reduction <add>, %13, %cst_7 [1] : vector<2x32xf32> to vector<2xf32>
    %15 = vector.shape_cast %14 : vector<2xf32> to vector<2x1xf32>
    %16 = vector.extract_strided_slice %6 {offsets = [0, 96], sizes = [2, 32], strides = [1, 1]} : vector<2x128xf32> to vector<2x32xf32>
    %cst_8 = arith.constant dense<0.000000e+00> : vector<2xf32>
    %17 = vector.multi_reduction <add>, %16, %cst_8 [1] : vector<2x32xf32> to vector<2xf32>
    %18 = vector.shape_cast %17 : vector<2xf32> to vector<2x1xf32>
    %19 = tpu.concatenate %9, %12, %15, %18 in 1 : vector<2x1xf32>, vector<2x1xf32>, vector<2x1xf32>, vector<2x1xf32> -> vector<2x4xf32>
    %20 = math.sqrt %19 : vector<2x4xf32>
    %cst_9 = arith.constant 2.000000e+00 : f32
    %21 = vector.broadcast %cst_9 : f32 to vector<2x4xf32>
    %22 = arith.subf %21, %20 : vector<2x4xf32>
    %cst_10 = arith.constant 0.000000e+00 : f32
    %23 = vector.broadcast %cst_10 : f32 to vector<2x4xf32>
    %24 = arith.maximumf %22, %23 : vector<2x4xf32>
    %25 = arith.mulf %24, %24 : vector<2x4xf32>
    %26 = arith.subf %25, %19 : vector<2x4xf32>
    %27 = arith.mulf %2, %26 : vector<2x4xf32>
    %28 = arith.addf %19, %27 : vector<2x4xf32>
    %29 = vector.shape_cast %28 : vector<2x4xf32> to vector<1x2x4xf32>
    %cst_11 = arith.constant dense<0.000000e+00> : vector<1xf32>
    %30 = vector.multi_reduction <add>, %29, %cst_11 [1, 2] : vector<1x2x4xf32> to vector<1xf32>
    %31 = vector.shape_cast %30 : vector<1xf32> to vector<1x1x1xf32>
    %32 = vector.extract %31[0, 0, 0] : f32 from vector<1x1x1xf32>
    %33 = vector.broadcast %32 : f32 to vector<1x8x128xf32>
    %c0_12 = arith.constant 0 : index
    %c0_13 = arith.constant 0 : index
    %c0_14 = arith.constant 0 : index
    %34 = vector.load %arg4[%c0_12, %c0_13, %c0_14] : memref<1x8x128xf32, #tpu.memory_space<vmem>>, vector<1x8x128xf32>
    tpu.vector_store %arg4[%c0_12, %c0_13, %c0_14], %33 {strides = array<i32>} : memref<1x8x128xf32, #tpu.memory_space<vmem>>, vector<1x8x128xf32>,
    return
  }
  func.func @transform_0(%arg0: i32) -> (i32, i32) {
    %c0_i32 = arith.constant 0 : i32
    %c0_i32_0 = arith.constant 0 : i32
    return %arg0, %c0_i32 : i32, i32
  }
  func.func @transform_1(%arg0: i32) -> (i32, i32) {
    %c0_i32 = arith.constant 0 : i32
    %c0_i32_0 = arith.constant 0 : i32
    return %arg0, %c0_i32 : i32, i32
  }
  func.func @transform_2(%arg0: i32) -> (i32, i32) {
    %c0_i32 = arith.constant 0 : i32
    %c0_i32_0 = arith.constant 0 : i32
    return %arg0, %c0_i32 : i32, i32
  }
  func.func @transform_3(%arg0: i32) -> (i32, i32, i32) {
    %c0_i32 = arith.constant 0 : i32
    %c0_i32_0 = arith.constant 0 : i32
    %c0_i32_1 = arith.constant 0 : i32
    return %arg0, %c0_i32, %c0_i32_0 : i32, i32, i32
  }
}

</mosaic_0001>

<llo_original>
// kernel: tpu_custom_call.1
$region0: #{tpu_custom_call.1}
  #allocation0 [shape = 'u32[]', space=smem, size = 0x4, offset = 0x4, fixed_abs, tag = 'smem constant byte address 0x4 - core index']
  #allocation1 [shape = 'u32[144,128]{1,0:T(1,128)}', space=vmem, size = 0x12000, scoped, tag = 'internal scratch']
  %s0 = inlined_call_operand.hbm [shape: f32[2,128], index: 0, kind: input, shape index: {}]
  %s1 = inlined_call_operand.vmem [shape: f32[2,128], index: 1, kind: input, shape index: {}]
  %s2 = inlined_call_operand.vmem [shape: f32[2,4], index: 2, kind: input, shape index: {}]
  %s3 = inlined_call_operand.hbm [shape: f32[1,8,128], index: 3, kind: output, shape index: {}]
  %s4 = sld [smem:[#allocation0]]
  $region26: #{tpu_custom_call.1} parent=0
    _
  %s6 = ssub.s32 1, %s4
  %s7 = scalar_select 0, %s6, %s4
  $region1: #{tpu_custom_call.1} parent=0
    #allocation2 [shape = 'u8[1024]{0}', space=vmem, size = 0x400, scoped, tag = 'input window, operand 0, single buffered']
    #allocation3 [shape = 's32[1]{0}', space=sflag, size = 0x4, scoped, tag = 'scoped memory for tpu_custom_call.1']
    #allocation4 [shape = 's32[1]{0}', space=sflag, size = 0x4, scoped, tag = 'scoped memory for tpu_custom_call.1']
    #allocation5 [shape = 'u8[4096]{0}', space=vmem, size = 0x1000, scoped, tag = 'output window, operand 0, single buffered']
    %8 = vsyncpa [#allocation3], 0
    %9 = vsyncpa [#allocation4], 0
    // Predicated region
    $region2: #{tpu_custom_call.1} parent=1 // pred_check
      _
    $region3: #{tpu_custom_call.1} parent=1 // pred_check_branch
      %11 = sbr.rel (0) target = $region5
    $region4: #{tpu_custom_call.1} parent=1 // pred_region
      %s13 = ssub.s32 32, 32
      %14 = vsyncadd [#allocation3], %s13
      %s16 = sshll.u32 [#allocation2], 4
      %s17 = int_to_ptr.vmem [resolvable:$true] %s16
      %19 = dma.hbm_to_vmem [thread:$0]  %s0, 32, %s17, [#allocation3]
    $region5: #{tpu_custom_call.1} parent=1 // pred_fallthru
      _
    // Predicated region
    $region6: #{tpu_custom_call.1} parent=1 // pred_check
      _
    $region7: #{tpu_custom_call.1} parent=1 // pred_check_branch
      %21 = sbr.rel (0) target = $region9
    $region8: #{tpu_custom_call.1} parent=1 // pred_region
      _
    $region9: #{tpu_custom_call.1} parent=1 // pred_fallthru
      _
    // Predicated region
    $region10: #{tpu_custom_call.1} parent=1 // pred_check
      _
    $region11: #{tpu_custom_call.1} parent=1 // pred_check_branch
      %23 = sbr.rel (0) target = $region13
    $region12: #{tpu_custom_call.1} parent=1 // pred_region
      _
    $region13: #{tpu_custom_call.1} parent=1 // pred_fallthru
      _
    // Predicated region
    $region14: #{tpu_custom_call.1} parent=1 // pred_check
      _
    $region15: #{tpu_custom_call.1} parent=1 // pred_check_branch
      %25 = sbr.rel (0) target = $region17
    $region16: #{tpu_custom_call.1} parent=1 // pred_region
      %26 = dma.done [#allocation3], 32
    $region17: #{tpu_custom_call.1} parent=1 // pred_fallthru
      _
    %v27 = vld [vmem:[#allocation2] sm:$0x3]
    %v28 = vld [vmem:[%s1] sm:$0x3]
    %v29 = vld [vmem:[%s2] sm:$0x3]
    %v30 = vsub.f32 %v27, %v28
    %v31 = vadd.f32 %v30, 1e-06
    %v32 = vmul.f32 %v31, %v31
    %vm33 = vcmask 254976
    %v34 = vsel %vm33, %v32, 0.0
    %35 = vadd.xlane.f32.xlu0 %v34
    %v36 = vpop.xlane.xlu0 %35
    %38 = vrot.lane.b32.xlu0 %v32, 96
    %v39 = vpop.permute.xlu0 %38
    %v41 = vsel %vm33, %v39, 0.0
    %42 = vadd.xlane.f32.xlu0 %v41
    %v43 = vpop.xlane.xlu0 %42
    %44 = vrot.lane.b32.xlu0 %v32, 64
    %v45 = vpop.permute.xlu0 %44
    %v47 = vsel %vm33, %v45, 0.0
    %48 = vadd.xlane.f32.xlu0 %v47
    %v49 = vpop.xlane.xlu0 %48
    %50 = vrot.lane.b32.xlu0 %v32, 32
    %v51 = vpop.permute.xlu0 %50
    %v53 = vsel %vm33, %v51, 0.0
    %54 = vadd.xlane.f32.xlu0 %v53
    %v55 = vpop.xlane.xlu0 %54
    %vm56 = vcmask 7168
    %v57 = vsel %vm56, %v36, %v43
    %vm58 = vcmask 15360
    %v59 = vsel %vm58, %v57, %v49
    %vm60 = vcmask 23552
    %v61 = vsel %vm60, %v59, %v55
    %v62 = vrsqrt.pop %v61
    %v63 = vmul.f32 %v61, %v62
    %vm64 = vcmp.eq.f32.partialorder %v61, inf
    %v65 = vsel %vm64, %v61, %v63
    %vm66 = vcmp.eq.f32.partialorder %v61, 0.0
    %v67 = vand.u32 %v61, 2147483648
    %v68 = vsel %vm66, %v67, %v65
    %v69 = vsub.f32 2.0, %v68
    %v70 = vmax.f32 %v69, 0.0
    %v71 = vmul.f32 %v70, %v70
    %v72 = vsub.f32 %v71, %v61
    %v73 = vmul.f32 %v29, %v72
    %v74 = vadd.f32 %v61, %v73
    %vm75 = vcmask 25600
    %v76 = vsel %vm75, %v74, 0.0
    %77 = vadd.xlane.f32.xlu0 %v76
    %v78 = vpop.xlane.xlu0 %77
    %v79 = vrot.slane %v78, 4
    %v80 = vadd.f32 %v78, %v79
    %v81 = vrot.slane %v80, 2
    %v82 = vadd.f32 %v80, %v81
    %v83 = vrot.slane %v82, 1
    %v84 = vadd.f32 %v82, %v83
    %s85 = vtos %v84
    %v86 = vstv %s85
    %87 = vst [vmem:[#allocation5] sm:$0xff] %v86
    // Predicated region
    $region18: #{tpu_custom_call.1} parent=1 // pred_check
      _
    $region19: #{tpu_custom_call.1} parent=1 // pred_check_branch
      %89 = sbr.rel (0) target = $region21
    $region20: #{tpu_custom_call.1} parent=1 // pred_region
      %s91 = ssub.s32 128, 128
      %92 = vsyncadd [#allocation4], %s91
      %s94 = sshll.u32 [#allocation5], 4
      %s95 = int_to_ptr.vmem [resolvable:$true] %s94
      %97 = dma.vmem_to_hbm [thread:$0]  %s95, 128, %s3, [#allocation4]
    $region21: #{tpu_custom_call.1} parent=1 // pred_fallthru
      _
    // Predicated region
    $region22: #{tpu_custom_call.1} parent=1 // pred_check
      _
    $region23: #{tpu_custom_call.1} parent=1 // pred_check_branch
      %99 = sbr.rel (0) target = $region25
    $region24: #{tpu_custom_call.1} parent=1 // pred_region
      %100 = dma.done [#allocation4], 128
    $region25: #{tpu_custom_call.1} parent=1 // pred_fallthru
      _
    %101 = vsyncpa [#allocation3], 1
    %102 = vsyncpa [#allocation4], 1

</llo_original>
